<compile_context>
chip_gen: v5e
topology: v5e:2x2
jax: 0.10.0
libtpu: 0.0.40
codegen_flags: <defaults>
</compile_context>

<pallas_src>
import functools

import jax
import jax.numpy as jnp
import numpy as np
from jax import lax
from jax.experimental import pallas as pl
from jax.experimental.pallas import tpu as pltpu

_EPS = 1e-5
_MiB = 1024 * 1024
_LANE = 128
_MAX_LANE_TILE = 4096  # bounds per-step unroll / vreg pressure


def _physical_vmem_bytes() -> int:
    """Per-TensorCore VMEM; conservative 64 MiB (v7x) fallback if query fails."""
    try:
        v = getattr(pltpu.get_tpu_info(), "vmem_capacity_bytes", None)
        if v:
            return int(v)
    except Exception:
        pass
    return 64 * _MiB


def _divisors_desc(n: int):
    return [d for d in range(n, 0, -1) if n % d == 0]


def _pick_tiles(n: int, hw: int, col_bytes: int, block_budget: int):
    """(n_tile, l_tile): lane tile = largest multiple-of-128 divisor of hw
    (capped), then batch tile = largest divisor of N keeping the per-step
    block bytes within budget."""
    lane_cands = [d for d in range(min(hw, _MAX_LANE_TILE), _LANE - 1, -1)
                  if hw % d == 0 and d % _LANE == 0]
    if lane_cands:
        l_tile = next((d for d in lane_cands if d * col_bytes <= block_budget),
                      lane_cands[-1])
    else:
        # TODO(synk): hw not a multiple of 128 -> single full-width lane block;
        # a masked remainder tile would bound VMEM for huge odd spatial sizes.
        l_tile = hw
    n_tile = 1
    for d in _divisors_desc(n):
        if d * l_tile * col_bytes <= block_budget:
            n_tile = d
            break
    return n_tile, l_tile


def _vmem_limit(per_step_bytes: int, cap: int) -> int:
    return int(min(max(4 * per_step_bytes, 16 * _MiB), cap))


# --------------------------------------------------------------------------
# kernels
# --------------------------------------------------------------------------
def _make_stats_kernel(num_ins, concatenate, l_tile, write_combined):
    """Pass 1: lane-dense per-channel partial sums / sums-of-squares.

    Accumulates into (n_tile, c, 256) f32 output blocks resident across the
    lane grid axis: lanes [0,128) hold partial sums, [128,256) partial
    sums-of-squares.  Per-step work is pure VPU adds with aligned stores; the
    128->1 and batch reductions happen in tiny glue code outside the kernel.
    """
    num_stats = num_ins if concatenate else 1

    def accum(s, sr):
        full = (l_tile // _LANE) * _LANE
        for k in range(0, full, _LANE):
            ch = s[:, :, k:k + _LANE]
            sr[:, :, 0:_LANE] += ch
            sr[:, :, _LANE:2 * _LANE] += ch * ch
        if full < l_tile:  # remainder only when hw is not a multiple of 128
            rem = s[:, :, full:l_tile]
            sr[:, :, 0:1] += jnp.sum(rem, axis=-1, keepdims=True)
            sr[:, :, _LANE:_LANE + 1] += jnp.sum(rem * rem, axis=-1, keepdims=True)

    def kernel(*refs):
        x_refs = refs[:num_ins]
        stat_refs = refs[num_ins:num_ins + num_stats]
        comb_ref = refs[num_ins + num_stats] if write_combined else None

        @pl.when(pl.program_id(1) == 0)
        def _init():
            for sr in stat_refs:
                sr[...] = jnp.zeros_like(sr)

        if concatenate:
            for j, r in enumerate(x_refs):
                accum(r[...].astype(jnp.float32), stat_refs[j])
        else:
            s = x_refs[0][...].astype(jnp.float32)
            for r in x_refs[1:]:
                s = s + r[...].astype(jnp.float32)
            accum(s, stat_refs[0])
            if write_combined:
                comb_ref[...] = s.astype(comb_ref.dtype)

    return kernel


def _make_norm_kernel(num_x, offsets, concatenate, c_in, c_out):
    """Pass 2: y = x * scale + shift (folded BN affine) + zero channel pad.
    scale/shift arrive packed as one (c_in, 2) f32 resident operand."""

    def kernel(*refs):
        x_refs = refs[:num_x]
        ss_ref = refs[num_x]
        out_ref = refs[num_x + 1]
        odt = out_ref.dtype
        scale = ss_ref[:, 0:1]
        shift = ss_ref[:, 1:2]

        if concatenate:
            for j, r in enumerate(x_refs):
                off, cj = offsets[j]
                s = r[...].astype(jnp.float32)
                y = s * scale[off:off + cj, :] + shift[off:off + cj, :]
                out_ref[:, off:off + cj, :] = y.astype(odt)
        else:
            s = x_refs[0][...].astype(jnp.float32)
            for r in x_refs[1:]:
                s = s + r[...].astype(jnp.float32)
            out_ref[:, 0:c_in, :] = (s * scale + shift).astype(odt)

        if c_out > c_in:
            # TODO(synk): assemble the padded tile in vregs (concatenate) to avoid
            # sublane-masked slice stores when c_in % 8 != 0 (stores are VMEM-side;
            # the HBM writeback DMA stays rectangular either way).
            out_ref[:, c_in:, :] = jnp.zeros(
                (out_ref.shape[0], c_out - c_in, out_ref.shape[2]), odt)

    return kernel


def _make_resident_kernel(num_ins, offsets, concatenate, c_in, c_out, n, hw):
    """Single-call fast path: whole problem resident in VMEM (one HBM read,
    one HBM write).  Two-pass mean/var for better numerics."""

    def kernel(*refs):
        x_refs = refs[:num_ins]
        gb_ref = refs[num_ins]
        out_ref = refs[num_ins + 1]
        odt = out_ref.dtype
        count = jnp.float32(n * hw)
        gamma = gb_ref[:, 0:1]
        beta = gb_ref[:, 1:2]

        def normalize(s, g, b):
            mean = jnp.sum(jnp.sum(s, axis=2, keepdims=True),
                           axis=0, keepdims=True) / count
            d = s - mean
            var = jnp.sum(jnp.sum(d * d, axis=2, keepdims=True),
                          axis=0, keepdims=True) / count
            inv = lax.rsqrt(var + _EPS)
            return (d * (g * inv) + b).astype(odt)

        if concatenate:
            for j, r in enumerate(x_refs):
                off, cj = offsets[j]
                s = r[...].astype(jnp.float32)
                out_ref[:, off:off + cj, :] = normalize(
                    s, gamma[off:off + cj, :], beta[off:off + cj, :])
        else:
            s = x_refs[0][...].astype(jnp.float32)
            for r in x_refs[1:]:
                s = s + r[...].astype(jnp.float32)
            out_ref[:, 0:c_in, :] = normalize(s, gamma, beta)

        if c_out > c_in:
            out_ref[:, c_in:, :] = jnp.zeros(
                (out_ref.shape[0], c_out - c_in, out_ref.shape[2]), odt)

    return kernel


# --------------------------------------------------------------------------
# wrapper
# --------------------------------------------------------------------------
def node_forward(ins, gamma, beta, *, concatenate: bool, post_pad_channels: int,
                 force_tiled: bool = False):
    """Pallas-backed Node.forward. `ins` is a list of NCHW arrays."""
    ins = [jnp.asarray(a) for a in ins]
    N, _, H, W = ins[0].shape
    hw = H * W
    chs = [int(a.shape[1]) for a in ins]

    if concatenate:
        c_in = sum(chs)
        offsets, off = [], 0
        for c in chs:
            offsets.append((off, c))
            off += c
    else:
        assert all(c == chs[0] for c in chs), "sum node requires equal channel counts"
        c_in = chs[0]
        offsets = [(0, c) for c in chs]

    c_out = int(post_pad_channels)
    dtype = ins[0].dtype
    itemsize = jnp.dtype(dtype).itemsize
    flat = [a.reshape(N, a.shape[1], hw) for a in ins]  # free reshape, no transpose

    phys = _physical_vmem_bytes()
    vmem_cap = int(min(phys // 2, 64 * _MiB))  # <=32 MiB scoped on v7x, 64 on v5e/v6e

    gamma32 = gamma.astype(jnp.float32).reshape(-1)
    beta32 = beta.astype(jnp.float32).reshape(-1)

    # ------------- VMEM-resident single-call fast path (one HBM read) -------------
    in_bytes = sum(N * c * hw * itemsize for c in chs)
    out_bytes = N * c_out * hw * itemsize
    work_bytes = 8 * N * c_in * hw  # ~two f32 working copies
    resident_need = in_bytes + out_bytes + work_bytes + _MiB
    if not force_tiled and resident_need <= phys // 4:
        gb = jnp.stack([gamma32, beta32], axis=1)  # (c_in, 2)
        res_limit = int(min(max(3 * resident_need, 16 * _MiB), (phys * 3) // 4))
        out_flat = pl.pallas_call(
            _make_resident_kernel(len(flat), offsets, concatenate, c_in, c_out, N, hw),
            grid=(1,),
            in_specs=[pl.BlockSpec((N, c, hw), lambda i: (0, 0, 0)) for c in chs]
                     + [pl.BlockSpec((c_in, 2), lambda i: (0, 0))],
            out_specs=pl.BlockSpec((N, c_out, hw), lambda i: (0, 0, 0)),
            out_shape=jax.ShapeDtypeStruct((N, c_out, hw), dtype),
            compiler_params=pltpu.CompilerParams(
                dimension_semantics=("arbitrary",),
                vmem_limit_bytes=res_limit),
        )(*flat, gb)
        return out_flat.reshape(N, c_out, H, W)

    # ---------------------------- tiled two-pass path ----------------------------
    write_combined = (not concatenate) and len(flat) >= 3  # save reads for fan-in >= 3
    chs_norm = [c_in] if write_combined else chs

    col_p1 = sum(chs) * itemsize + (c_in * itemsize if write_combined else 0)
    col_p2 = (sum(chs_norm) + c_out) * itemsize
    block_budget = vmem_cap // 4
    n_tile, l_tile = _pick_tiles(N, hw, max(col_p1, col_p2), block_budget)
    num_nb, num_lb = N // n_tile, hw // l_tile

    # ---- pass 1: per-channel lane-dense partial sum / sum-of-squares ----
    num_stats = len(flat) if concatenate else 1
    if concatenate:
        stats_shapes = [jax.ShapeDtypeStruct((N, c, 2 * _LANE), jnp.float32) for c in chs]
        stats_specs = [pl.BlockSpec((n_tile, c, 2 * _LANE), lambda nb, l: (nb, 0, 0))
                       for c in chs]
    else:
        stats_shapes = [jax.ShapeDtypeStruct((N, c_in, 2 * _LANE), jnp.float32)]
        stats_specs = [pl.BlockSpec((n_tile, c_in, 2 * _LANE), lambda nb, l: (nb, 0, 0))]
    out_shapes1 = list(stats_shapes)
    out_specs1 = list(stats_specs)
    if write_combined:
        out_shapes1.append(jax.ShapeDtypeStruct((N, c_in, hw), dtype))
        out_specs1.append(pl.BlockSpec((n_tile, c_in, l_tile), lambda nb, l: (nb, 0, l)))

    p1_bytes = n_tile * l_tile * col_p1 + n_tile * c_in * 2 * _LANE * 4
    outs1 = pl.pallas_call(
        _make_stats_kernel(len(flat), concatenate, l_tile, write_combined),
        grid=(num_nb, num_lb),
        in_specs=[pl.BlockSpec((n_tile, c, l_tile), lambda nb, l: (nb, 0, l)) for c in chs],
        out_specs=out_specs1,
        out_shape=out_shapes1,
        compiler_params=pltpu.CompilerParams(
            dimension_semantics=("parallel", "arbitrary"),
            vmem_limit_bytes=_vmem_limit(p1_bytes, vmem_cap)),
    )(*flat)
    stat_outs = outs1[:num_stats]
    x_norm = [outs1[num_stats]] if write_combined else flat

    # ---- tiny glue: finish reductions, fold BN into per-channel scale/shift ----
    count = jnp.float32(N * hw)
    sums = jnp.concatenate([jnp.sum(p[:, :, :_LANE], axis=(0, 2)) for p in stat_outs])
    sqs = jnp.concatenate([jnp.sum(p[:, :, _LANE:], axis=(0, 2)) for p in stat_outs])
    mean = sums / count
    var = jnp.maximum(sqs / count - mean * mean, 0.0)
    inv_std = lax.rsqrt(var + _EPS)
    scale = gamma32 * inv_std
    shift = beta32 - mean * scale
    ss = jnp.stack([scale, shift], axis=1)  # packed (c_in, 2) f32 operand

    # ---- pass 2: normalize + zero-pad, flattened parallel grid (megacore) ----
    p2_bytes = n_tile * l_tile * col_p2 + c_in * 2 * 4
    idx3 = lambda g: (g // num_lb, 0, g % num_lb)
    out_flat = pl.pallas_call(
        _make_norm_kernel(len(x_norm), offsets, concatenate, c_in, c_out),
        grid=(num_nb * num_lb,),
        in_specs=[pl.BlockSpec((n_tile, c, l_tile), idx3) for c in chs_norm]
                 + [pl.BlockSpec((c_in, 2), lambda g: (0, 0))],
        out_specs=pl.BlockSpec((n_tile, c_out, l_tile), idx3),
        out_shape=jax.ShapeDtypeStruct((N, c_out, hw), dtype),
        compiler_params=pltpu.CompilerParams(
            dimension_semantics=("parallel",),
            vmem_limit_bytes=_vmem_limit(p2_bytes, vmem_cap)),
    )(*x_norm, ss)

    return out_flat.reshape(N, c_out, H, W)  # free reshape back to NCHW


def node_forward_ref(ins, gamma, beta, *, concatenate: bool, post_pad_channels: int):
    """Pure-JAX reference mirroring the PyTorch forward."""
    out = (jnp.concatenate(ins, axis=1) if concatenate
           else functools.reduce(lambda a, b: a + b, ins))
    mean = out.mean(axis=(0, 2, 3), keepdims=True)
    var = ((out - mean) ** 2).mean(axis=(0, 2, 3), keepdims=True)
    y = (gamma.reshape(1, -1, 1, 1) * (out - mean) / jnp.sqrt(var + _EPS)
         + beta.reshape(1, -1, 1, 1))
    pad = post_pad_channels - y.shape[1]
    if pad > 0:
        y = jnp.concatenate(
            [y, jnp.zeros((y.shape[0], pad, y.shape[2], y.shape[3]), y.dtype)], axis=1)
    return y


if __name__ == "__main__":
    key = jax.random.PRNGKey(0)
    k1, k2, k3, k4 = jax.random.split(key, 4)

    N, C, H, W = 2, 4, 16, 16
    x1 = jax.random.normal(k1, (N, C, H, W), dtype=jnp.float32)
    x2 = jax.random.normal(k2, (N, C, H, W), dtype=jnp.float32)
    x3 = jax.random.normal(k3, (N, 2, H, W), dtype=jnp.float32)
    x4 = jax.random.normal(k4, (N, C, H, W), dtype=jnp.float32)

    # --- Config A: sum node, is_input_node with cell_type == 1 => pad to 2*C ---
    gamma = 1.0 + 0.1 * jnp.arange(C, dtype=jnp.float32)
    beta = 0.01 * jnp.arange(C, dtype=jnp.float32)
    post_pad = 2 * C
    ref_a = node_forward_ref([x1, x2], gamma, beta,
                             concatenate=False, post_pad_channels=post_pad)
    for ft in (False, True):  # fast VMEM-resident path, then tiled two-pass path
        out_a = node_forward([x1, x2], gamma, beta, concatenate=False,
                             post_pad_channels=post_pad, force_tiled=ft)
        out_a = jax.block_until_ready(out_a)
        assert out_a.shape == (N, post_pad, H, W), out_a.shape
        np.testing.assert_allclose(np.asarray(out_a), np.asarray(ref_a),
                                   atol=1e-4, rtol=1e-4)

    # --- Config B: concat node (mixed channel fan-in), no pad ---
    c_cat = C + 2
    gamma_c = 1.0 + 0.05 * jnp.arange(c_cat, dtype=jnp.float32)
    beta_c = -0.02 * jnp.arange(c_cat, dtype=jnp.float32)
    ref_b = node_forward_ref([x1, x3], gamma_c, beta_c,
                             concatenate=True, post_pad_channels=c_cat)
    for ft in (False, True):
        out_b = node_forward([x1, x3], gamma_c, beta_c, concatenate=True,
                             post_pad_channels=c_cat, force_tiled=ft)
        out_b = jax.block_until_ready(out_b)
        assert out_b.shape == (N, c_cat, H, W), out_b.shape
        np.testing.assert_allclose(np.asarray(out_b), np.asarray(ref_b),
                                   atol=1e-4, rtol=1e-4)

    # --- Config C: sum node, fan-in 3 (exercises the combined-tensor rewrite) ---
    ref_c = node_forward_ref([x1, x2, x4], gamma, beta,
                             concatenate=False, post_pad_channels=C)
    out_c = node_forward([x1, x2, x4], gamma, beta, concatenate=False,
                         post_pad_channels=C, force_tiled=True)
    out_c = jax.block_until_ready(out_c)
    assert out_c.shape == (N, C, H, W), out_c.shape
    np.testing.assert_allclose(np.asarray(out_c), np.asarray(ref_c),
                               atol=1e-4, rtol=1e-4)

    print("KERNEL_OK")
</pallas_src>

<mosaic_0001>
module attributes {stable_mosaic.version = 11 : i64} {
  func.func @kernel(%arg0: i32, %arg1: memref<2x4x256xf32, #tpu.memory_space<vmem>>, %arg2: memref<2x4x256xf32, #tpu.memory_space<vmem>>, %arg3: memref<4x2xf32, #tpu.memory_space<vmem>>, %arg4: memref<2x8x256xf32, #tpu.memory_space<vmem>>) attributes {dimension_semantics = [#tpu.dimension_semantics<arbitrary>], iteration_bounds = array<i64: 1>, scalar_prefetch = 0 : i64, scratch_operands = 0 : i64, tpu.core_type = #tpu.core_type<tc>, window_params = [{pipeline_mode = #tpu.pipeline_mode<synchronous>, transform_indices = @transform_0, window_bounds = array<i64: 2, 4, 256>}, {pipeline_mode = #tpu.pipeline_mode<synchronous>, transform_indices = @transform_1, window_bounds = array<i64: 2, 4, 256>}, {pipeline_mode = #tpu.pipeline_mode<synchronous>, transform_indices = @transform_2, window_bounds = array<i64: 4, 2>}, {pipeline_mode = #tpu.pipeline_mode<synchronous>, transform_indices = @transform_3, window_bounds = array<i64: 2, 8, 256>}]} {
    %c0 = arith.constant 0 : index
    %c0_0 = arith.constant 0 : index
    %0 = vector.load %arg3[%c0, %c0_0] : memref<4x2xf32, #tpu.memory_space<vmem>>, vector<4x1xf32>
    %c0_1 = arith.constant 0 : index
    %c1 = arith.constant 1 : index
    %1 = vector.load %arg3[%c0_1, %c1] : memref<4x2xf32, #tpu.memory_space<vmem>>, vector<4x1xf32>
    %c0_2 = arith.constant 0 : index
    %c0_3 = arith.constant 0 : index
    %c0_4 = arith.constant 0 : index
    %2 = vector.load %arg1[%c0_2, %c0_3, %c0_4] : memref<2x4x256xf32, #tpu.memory_space<vmem>>, vector<2x4x256xf32>
    %c0_5 = arith.constant 0 : index
    %c0_6 = arith.constant 0 : index
    %c0_7 = arith.constant 0 : index
    %3 = vector.load %arg2[%c0_5, %c0_6, %c0_7] : memref<2x4x256xf32, #tpu.memory_space<vmem>>, vector<2x4x256xf32>
    %4 = arith.addf %2, %3 : vector<2x4x256xf32>
    %cst = arith.constant dense<0.000000e+00> : vector<2x4xf32>
    %5 = vector.multi_reduction <add>, %4, %cst [2] : vector<2x4x256xf32> to vector<2x4xf32>
    %6 = vector.shape_cast %5 : vector<2x4xf32> to vector<2x4x1xf32>
    %cst_8 = arith.constant dense<0.000000e+00> : vector<4x1xf32>
    %7 = vector.multi_reduction <add>, %6, %cst_8 [0] : vector<2x4x1xf32> to vector<4x1xf32>
    %8 = vector.shape_cast %7 : vector<4x1xf32> to vector<1x4x1xf32>
    %cst_9 = arith.constant 5.120000e+02 : f32
    %9 = vector.broadcast %cst_9 : f32 to vector<1x4x1xf32>
    %10 = arith.divf %8, %9 : vector<1x4x1xf32>
    %11 = vector.broadcast %10 : vector<1x4x1xf32> to vector<2x4x256xf32>
    %12 = arith.subf %4, %11 : vector<2x4x256xf32>
    %13 = arith.mulf %12, %12 : vector<2x4x256xf32>
    %cst_10 = arith.constant dense<0.000000e+00> : vector<2x4xf32>
    %14 = vector.multi_reduction <add>, %13, %cst_10 [2] : vector<2x4x256xf32> to vector<2x4xf32>
    %15 = vector.shape_cast %14 : vector<2x4xf32> to vector<2x4x1xf32>
    %cst_11 = arith.constant dense<0.000000e+00> : vector<4x1xf32>
    %16 = vector.multi_reduction <add>, %15, %cst_11 [0] : vector<2x4x1xf32> to vector<4x1xf32>
    %17 = vector.shape_cast %16 : vector<4x1xf32> to vector<1x4x1xf32>
    %cst_12 = arith.constant 5.120000e+02 : f32
    %18 = vector.broadcast %cst_12 : f32 to vector<1x4x1xf32>
    %19 = arith.divf %17, %18 : vector<1x4x1xf32>
    %cst_13 = arith.constant 9.99999974E-6 : f32
    %20 = vector.broadcast %cst_13 : f32 to vector<1x4x1xf32>
    %21 = arith.addf %19, %20 : vector<1x4x1xf32>
    %22 = math.rsqrt %21 : vector<1x4x1xf32>
    %23 = vector.shape_cast %0 : vector<4x1xf32> to vector<1x4x1xf32>
    %24 = arith.mulf %23, %22 : vector<1x4x1xf32>
    %25 = vector.broadcast %24 : vector<1x4x1xf32> to vector<2x4x256xf32>
    %26 = arith.mulf %12, %25 : vector<2x4x256xf32>
    %27 = vector.shape_cast %1 : vector<4x1xf32> to vector<1x4x1xf32>
    %28 = vector.broadcast %27 : vector<1x4x1xf32> to vector<2x4x256xf32>
    %29 = arith.addf %26, %28 : vector<2x4x256xf32>
    %c0_14 = arith.constant 0 : index
    %c0_15 = arith.constant 0 : index
    %c0_16 = arith.constant 0 : index
    %30 = vector.load %arg4[%c0_14, %c0_15, %c0_16] : memref<2x8x256xf32, #tpu.memory_space<vmem>>, vector<2x4x256xf32>
    tpu.vector_store %arg4[%c0_14, %c0_15, %c0_16], %29 {strides = array<i32>} : memref<2x8x256xf32, #tpu.memory_space<vmem>>, vector<2x4x256xf32>,
    %cst_17 = arith.constant 0.000000e+00 : f32
    %31 = vector.broadcast %cst_17 : f32 to vector<2x4x256xf32>
    %c0_18 = arith.constant 0 : index
    %c4 = arith.constant 4 : index
    %c0_19 = arith.constant 0 : index
    %32 = vector.load %arg4[%c0_18, %c4, %c0_19] : memref<2x8x256xf32, #tpu.memory_space<vmem>>, vector<2x4x256xf32>
    tpu.vector_store %arg4[%c0_18, %c4, %c0_19], %31 {strides = array<i32>} : memref<2x8x256xf32, #tpu.memory_space<vmem>>, vector<2x4x256xf32>,
    return
  }
  func.func @transform_0(%arg0: i32) -> (i32, i32, i32) {
    %c0_i32 = arith.constant 0 : i32
    %c0_i32_0 = arith.constant 0 : i32
    %c0_i32_1 = arith.constant 0 : i32
    %c0_i32_2 = arith.constant 0 : i32
    return %c0_i32, %c0_i32_0, %c0_i32_1 : i32, i32, i32
  }
  func.func @transform_1(%arg0: i32) -> (i32, i32, i32) {
    %c0_i32 = arith.constant 0 : i32
    %c0_i32_0 = arith.constant 0 : i32
    %c0_i32_1 = arith.constant 0 : i32
    %c0_i32_2 = arith.constant 0 : i32
    return %c0_i32, %c0_i32_0, %c0_i32_1 : i32, i32, i32
  }
  func.func @transform_2(%arg0: i32) -> (i32, i32) {
    %c0_i32 = arith.constant 0 : i32
    %c0_i32_0 = arith.constant 0 : i32
    %c0_i32_1 = arith.constant 0 : i32
    return %c0_i32, %c0_i32_0 : i32, i32
  }
  func.func @transform_3(%arg0: i32) -> (i32, i32, i32) {
    %c0_i32 = arith.constant 0 : i32
    %c0_i32_0 = arith.constant 0 : i32
    %c0_i32_1 = arith.constant 0 : i32
    %c0_i32_2 = arith.constant 0 : i32
    return %c0_i32, %c0_i32_0, %c0_i32_1 : i32, i32, i32
  }
}

</mosaic_0001>

<llo_original>
// kernel: tpu_custom_call.1
$region0: #{tpu_custom_call.1}
  #allocation0 [shape = 'u32[]', space=smem, size = 0x4, offset = 0x4, fixed_abs, tag = 'smem constant byte address 0x4 - core index']
  #allocation1 [shape = 'u32[72,128]{1,0:T(1,128)}', space=vmem, size = 0x9000, scoped, tag = 'internal scratch']
  %s0 = inlined_call_operand.hbm [shape: f32[2,4,256], index: 0, kind: input, shape index: {}]
  %s1 = inlined_call_operand.hbm [shape: f32[2,4,256], index: 1, kind: input, shape index: {}]
  %s2 = inlined_call_operand.vmem [shape: f32[4,2], index: 2, kind: input, shape index: {}]
  %s3 = inlined_call_operand.hbm [shape: f32[2,8,256], index: 3, kind: output, shape index: {}]
  %s4 = sld [smem:[#allocation0]]
  $region30: #{tpu_custom_call.1} parent=0
    _
  %s6 = ssub.s32 1, %s4
  %s7 = scalar_select 0, %s6, %s4
  $region1: #{tpu_custom_call.1} parent=0
    #allocation2 [shape = 'u8[8192]{0}', space=vmem, size = 0x2000, scoped, tag = 'input window, operand 0, single buffered']
    #allocation3 [shape = 's32[1]{0}', space=sflag, size = 0x4, scoped, tag = 'scoped memory for tpu_custom_call.1']
    #allocation4 [shape = 's32[1]{0}', space=sflag, size = 0x4, scoped, tag = 'scoped memory for tpu_custom_call.1']
    #allocation5 [shape = 'u8[8192]{0}', space=vmem, size = 0x2000, scoped, tag = 'input window, operand 1, single buffered']
    #allocation6 [shape = 's32[1]{0}', space=sflag, size = 0x4, scoped, tag = 'scoped memory for tpu_custom_call.1']
    #allocation7 [shape = 'u8[16384]{0}', space=vmem, size = 0x4000, scoped, tag = 'output window, operand 0, single buffered']
    %8 = vsyncpa [#allocation3], 0
    %9 = vsyncpa [#allocation6], 0
    %10 = vsyncpa [#allocation4], 0
    // Predicated region
    $region2: #{tpu_custom_call.1} parent=1 // pred_check
      _
    $region3: #{tpu_custom_call.1} parent=1 // pred_check_branch
      %12 = sbr.rel (0) target = $region5
    $region4: #{tpu_custom_call.1} parent=1 // pred_region
      %14 = vsyncadd [#allocation3], 0
      %s15 = sshll.u32 %s0, 4
      %s16 = int_to_ptr.hbm [resolvable:$true] %s15
      %s17 = sshll.u32 [#allocation2], 4
      %s18 = int_to_ptr.vmem [resolvable:$true] %s17
      %23 = dma.hbm_to_vmem [thread:$0]  %s16, 256, %s18, [#allocation3], 128, 128, 8
    $region5: #{tpu_custom_call.1} parent=1 // pred_fallthru
      _
    // Predicated region
    $region6: #{tpu_custom_call.1} parent=1 // pred_check
      _
    $region7: #{tpu_custom_call.1} parent=1 // pred_check_branch
      %25 = sbr.rel (0) target = $region9
    $region8: #{tpu_custom_call.1} parent=1 // pred_region
      %27 = vsyncadd [#allocation6], 0
      %s28 = sshll.u32 %s1, 4
      %s29 = int_to_ptr.hbm [resolvable:$true] %s28
      %s30 = sshll.u32 [#allocation5], 4
      %s31 = int_to_ptr.vmem [resolvable:$true] %s30
      %36 = dma.hbm_to_vmem [thread:$0]  %s29, 256, %s31, [#allocation6], 128, 128, 8
    $region9: #{tpu_custom_call.1} parent=1 // pred_fallthru
      _
    // Predicated region
    $region10: #{tpu_custom_call.1} parent=1 // pred_check
      _
    $region11: #{tpu_custom_call.1} parent=1 // pred_check_branch
      %38 = sbr.rel (0) target = $region13
    $region12: #{tpu_custom_call.1} parent=1 // pred_region
      _
    $region13: #{tpu_custom_call.1} parent=1 // pred_fallthru
      _
    // Predicated region
    $region14: #{tpu_custom_call.1} parent=1 // pred_check
      _
    $region15: #{tpu_custom_call.1} parent=1 // pred_check_branch
      %40 = sbr.rel (0) target = $region17
    $region16: #{tpu_custom_call.1} parent=1 // pred_region
      %42 = dma.done [#allocation3], 256
    $region17: #{tpu_custom_call.1} parent=1 // pred_fallthru
      _
    // Predicated region
    $region18: #{tpu_custom_call.1} parent=1 // pred_check
      _
    $region19: #{tpu_custom_call.1} parent=1 // pred_check_branch
      %44 = sbr.rel (0) target = $region21
    $region20: #{tpu_custom_call.1} parent=1 // pred_region
      %46 = dma.done [#allocation6], 256
    $region21: #{tpu_custom_call.1} parent=1 // pred_fallthru
      _
    %v47 = vld [vmem:[%s2] sm:$0xf]
    %v48 = vld [vmem:[#allocation2] sm:$0xff]
    %v49 = vld [vmem:[#allocation2 + $0x8] sm:$0xff]
    %v50 = vld [vmem:[#allocation5] sm:$0xff]
    %v51 = vld [vmem:[#allocation5 + $0x8] sm:$0xff]
    %v52 = vadd.f32 %v48, %v50
    %v53 = vadd.f32 %v49, %v51
    %56 = vst [vmem:[#allocation1] ss:$2 sm:$0xff] %v52
    %v57 = vld.sshfl [vmem:[#allocation1] sm:$0xff pattern:$0x75316420]
    %v58 = vld.sshfl [vmem:[#allocation1 + $0x8] sm:$0xff pattern:$0x75316420]
    %s59 = scalar_lea.vmem [#allocation1], 16
    %60 = vst [vmem:[%s59] ss:$2 sm:$0xff] %v53
    %v61 = vld.sshfl [vmem:[#allocation1 + $0x10] sm:$0xff pattern:$0x75316420]
    %v62 = vld.sshfl [vmem:[#allocation1 + $0x18] sm:$0xff pattern:$0x75316420]
    %vm67 = vcmask 1043456
    %v68 = vsel %vm67, %v57, 0.0
    %v69 = vsel %vm67, %v58, 0.0
    %v70 = vadd.f32 %v68, %v69
    %71 = vadd.xlane.f32.xlu0 %v70
    %v72 = vpop.xlane.xlu0 %71
    %v73 = vsel %vm67, %v61, 0.0
    %v74 = vsel %vm67, %v62, 0.0
    %v75 = vadd.f32 %v73, %v74
    %76 = vadd.xlane.f32.xlu0 %v75
    %v77 = vpop.xlane.xlu0 %76
    %v78 = vsel %vm67, %v72, 0.0
    %v79 = vsel %vm67, %v77, 0.0
    %v80 = vadd.f32 %v78, %v79
    %v81 = vrcp.pop 512.0
    %v82 = vmul.f32 512.0, %v81
    %v83 = vsub.f32 1.0, %v82
    %v84 = vmul.f32 %v81, %v83
    %v85 = vadd.f32 %v81, %v84
    %vm86 = vweird.f32 %v81
    %v87 = vsel %vm86, %v81, %v85
    %v88 = vmul.f32 %v80, %v87
    %v91 = vunpack.c.l.s4 839922192
    %v92 = vunpack.c.0.s8 %v91
    %v93 = vperm.slane %v88, %v92
    %v95 = vsub.f32 %v52, %v93
    %v96 = vsub.f32 %v53, %v93
    %v97 = vmul.f32 %v95, %v95
    %v98 = vmul.f32 %v96, %v96
    %101 = vst [vmem:[#allocation1] ss:$2 sm:$0xff] %v97
    %v102 = vld.sshfl [vmem:[#allocation1] sm:$0xff pattern:$0x75316420]
    %v103 = vld.sshfl [vmem:[#allocation1 + $0x8] sm:$0xff pattern:$0x75316420]
    %s104 = scalar_lea.vmem [#allocation1], 16
    %105 = vst [vmem:[%s104] ss:$2 sm:$0xff] %v98
    %v106 = vld.sshfl [vmem:[#allocation1 + $0x10] sm:$0xff pattern:$0x75316420]
    %v107 = vld.sshfl [vmem:[#allocation1 + $0x18] sm:$0xff pattern:$0x75316420]
    %v112 = vsel %vm67, %v102, 0.0
    %v113 = vsel %vm67, %v103, 0.0
    %v114 = vadd.f32 %v112, %v113
    %115 = vadd.xlane.f32.xlu0 %v114
    %v116 = vpop.xlane.xlu0 %115
    %v117 = vsel %vm67, %v106, 0.0
    %v118 = vsel %vm67, %v107, 0.0
    %v119 = vadd.f32 %v117, %v118
    %120 = vadd.xlane.f32.xlu0 %v119
    %v121 = vpop.xlane.xlu0 %120
    %v122 = vsel %vm67, %v116, 0.0
    %v123 = vsel %vm67, %v121, 0.0
    %v124 = vadd.f32 %v122, %v123
    %v125 = vmul.f32 %v124, %v87
    %v126 = vadd.f32 %v125, 1e-05
    %v127 = vrsqrt.pop %v126
    %v128 = vmul.f32 %v127, %v126
    %v129 = vmul.f32 %v128, %v127
    %v130 = vmul.f32 0.5, %v129
    %v131 = vsub.f32 1.5, %v130
    %v132 = vmul.f32 %v127, %v131
    %vm133 = vweird.f32 %v126
    %vm134 = vweird.f32 %v127
    %vm135 = vmor %vm133, %vm134
    %v136 = vsel %vm135, %v127, %v132
    %v137 = vmul.f32 %v47, %v136
    %139 = vset.pattern.permute.xlu0 0
    %140 = vperm.xlu0 %139, %v137
    %v141 = vpop.permute.xlu0 %140
    %v143 = vunpack.c.l.s4 839922192
    %v144 = vunpack.c.0.s8 %v143
    %v145 = vperm.slane %v141, %v144
    %v147 = vmul.f32 %v95, %v145
    %v148 = vmul.f32 %v96, %v145
    %150 = vset.pattern.permute.xlu0 1
    %151 = vperm.xlu0 %150, %v47
    %v152 = vpop.permute.xlu0 %151
    %v154 = vunpack.c.l.s4 839922192
    %v155 = vunpack.c.0.s8 %v154
    %v156 = vperm.slane %v152, %v155
    %v158 = vadd.f32 %v147, %v156
    %v159 = vadd.f32 %v148, %v156
    %162 = vst [vmem:[#allocation1] ss:$2 sm:$0xff] %v158
    %v163 = vld.sshfl [vmem:[#allocation1] sm:$0xff pattern:$0x75316420]
    %v164 = vld.sshfl [vmem:[#allocation1 + $0x8] sm:$0xff pattern:$0x75316420]
    %s165 = scalar_lea.vmem [#allocation1], 16
    %166 = vst [vmem:[%s165] ss:$2 sm:$0xff] %v159
    %v167 = vld.sshfl [vmem:[#allocation1 + $0x10] sm:$0xff pattern:$0x75316420]
    %v168 = vld.sshfl [vmem:[#allocation1 + $0x18] sm:$0xff pattern:$0x75316420]
    %173 = vst [vmem:[#allocation7] sm:$0xf] %v163
    %174 = vst [vmem:[#allocation7 + $0x8] sm:$0xf] %v164
    %175 = vst [vmem:[#allocation7 + $0x10] sm:$0xf] %v167
    %176 = vst [vmem:[#allocation7 + $0x18] sm:$0xf] %v168
    %177 = vst [vmem:[#allocation7] sm:$0xf0] 0.0
    %178 = vst [vmem:[#allocation7 + $0x8] sm:$0xf0] 0.0
    %179 = vst [vmem:[#allocation7 + $0x10] sm:$0xf0] 0.0
    %180 = vst [vmem:[#allocation7 + $0x18] sm:$0xf0] 0.0
    // Predicated region
    $region22: #{tpu_custom_call.1} parent=1 // pred_check
      _
    $region23: #{tpu_custom_call.1} parent=1 // pred_check_branch
      %182 = sbr.rel (0) target = $region25
    $region24: #{tpu_custom_call.1} parent=1 // pred_region
      %184 = vsyncadd [#allocation4], 0
      %s185 = sshll.u32 [#allocation7], 4
      %s186 = int_to_ptr.vmem [resolvable:$true] %s185
      %s187 = sshll.u32 %s3, 4
      %s188 = int_to_ptr.hbm [resolvable:$true] %s187
      %193 = dma.vmem_to_hbm [thread:$0]  %s186, 512, %s188, [#allocation4], 256, 256, 16
    $region25: #{tpu_custom_call.1} parent=1 // pred_fallthru
      _
    // Predicated region
    $region26: #{tpu_custom_call.1} parent=1 // pred_check
      _
    $region27: #{tpu_custom_call.1} parent=1 // pred_check_branch
      %195 = sbr.rel (0) target = $region29
    $region28: #{tpu_custom_call.1} parent=1 // pred_region
      %197 = dma.done [#allocation4], 512
    $region29: #{tpu_custom_call.1} parent=1 // pred_fallthru
      _
    %198 = vsyncpa [#allocation3], 1
    %199 = vsyncpa [#allocation6], 1
    %200 = vsyncpa [#allocation4], 1

</llo_original>
